<compile_context>
chip_gen: v6e
topology: v6e:2x2x1
jax: 0.10.0
libtpu: 0.0.40
codegen_flags: <defaults>
</compile_context>

<pallas_src>
import functools

import jax
import jax.numpy as jnp
from jax.experimental import pallas as pl
from jax.experimental.pallas import tpu as pltpu


# ------------------------------- kernel ------------------------------------ #

def gem_kernel(p_ref, x_ref, o_ref, *, eps, inv_hw):
    """Fused GeM pooling for one (batch-tile, channel-tile) block.

    p_ref : (1,)           learnable exponent (SMEM)
    x_ref : (bt, ct, HW)   activations in native dtype (channels on sublanes,
                           H*W on lanes)
    o_ref : (bt, ct, 1)    pooled output
    """
    p = p_ref[0]
    x = x_ref[...].astype(jnp.float32)                 # cast in-kernel   (VPU)
    x = jnp.maximum(x, eps)                            # clamp(min=eps)   (VPU)
    xp = jnp.exp(p * jnp.log(x))                       # x ** p           (EUP)
    m = jnp.sum(xp, axis=-1, keepdims=True) * inv_hw   # mean over H*W    (XLU)
    m = jnp.maximum(m, 1e-30)                          # guard log(0) underflow
    y = jnp.exp(jnp.log(m) * (1.0 / p))                # mean ** (1/p)    (EUP)
    o_ref[...] = y.astype(o_ref.dtype)


# ------------------------------ tiling ------------------------------------- #

def _round_up(v, m):
    return -(-v // m) * m


def _choose_tiles(B, C, HW, budget_bytes=4 << 20):
    """Pick (bt, ct): channel tile is a multiple of 8 dividing C (or C itself
    when C % 8 != 0, which is only the small-C case); batch tile fattens the
    block when a single (ct, HW) slab is small.  Costs are lane-padding aware
    and expressed in f32-equivalent bytes (the in-kernel intermediates are
    f32 regardless of the streamed dtype)."""
    hw_pad = _round_up(HW, 128)
    row_bytes = hw_pad * 4                              # one channel row, f32
    if C % 8 != 0:
        ct = C                                          # full-dim block (small / odd C)
    else:
        fitting = [d for d in range(8, C + 1, 8)
                   if C % d == 0 and d * row_bytes <= budget_bytes]
        ct = max(fitting) if fitting else 8             # always bounded now
    block_bytes = ct * row_bytes
    bt = 1
    for d in range(1, B + 1):                           # largest divisor of B that fits
        if B % d == 0 and d * block_bytes <= budget_bytes:
            bt = d
    return bt, ct, hw_pad


# ------------------------------ wrapper ------------------------------------ #

@functools.partial(jax.jit, static_argnames=("eps",))
def gem_pooling(x, p, *, eps=1e-6):
    """GeM pooling.  x: (B, C, H, W) NCHW (any float dtype), p: (1,) exponent.

    Matches torch:  F.avg_pool2d(x.clamp(min=eps).pow(p), (H, W)).pow(1/p)
    and returns shape (B, C, 1, 1) in x.dtype.
    """
    B, C, H, W = x.shape
    HW = H * W
    x = x.reshape(B, C, HW)                            # free reshape, native dtype
    p = jnp.asarray(p, jnp.float32).reshape(1)

    bt, ct, hw_pad = _choose_tiles(B, C, HW)
    grid = (B // bt, C // ct)

    # Double-buffered input block (native dtype) + a few full-block f32
    # intermediates for the elementwise chain, plus headroom.
    in_block = bt * ct * hw_pad * x.dtype.itemsize
    f32_block = bt * ct * hw_pad * 4
    vmem_needed = 2 * in_block + 3 * f32_block + (2 << 20)
    vmem_limit = int(min(max(vmem_needed, 32 << 20), 64 << 20))

    out = pl.pallas_call(
        functools.partial(gem_kernel, eps=float(eps), inv_hw=1.0 / float(HW)),
        out_shape=jax.ShapeDtypeStruct((B, C, 1), x.dtype),
        grid=grid,
        in_specs=[
            pl.BlockSpec(memory_space=pltpu.MemorySpace.SMEM),      # p (scalar param)
            pl.BlockSpec((bt, ct, HW), lambda b, c: (b, c, 0)),     # activation block
        ],
        out_specs=pl.BlockSpec((bt, ct, 1), lambda b, c: (b, c, 0)),
        compiler_params=pltpu.CompilerParams(
            dimension_semantics=("parallel", "parallel"),
            vmem_limit_bytes=vmem_limit),
    )(p, x)
    return out.reshape(B, C, 1, 1)                     # free reshape (unit dims only)


# ------------------------------- demo --------------------------------------- #

if __name__ == "__main__":
    key = jax.random.PRNGKey(0)
    xkey, _ = jax.random.split(key)
    B, C, H, W = 2, 4, 16, 16
    x = jax.random.normal(xkey, (B, C, H, W), jnp.float32)
    p = jnp.array([3.0], jnp.float32)                  # nn.Parameter(torch.ones(1) * 3.0)

    out = gem_pooling(x, p)
    jax.block_until_ready(out)
    assert out.shape == (B, C, 1, 1) and out.dtype == jnp.float32

    # pure-JAX reference of the same math (correctness gate before perf work)
    xc = jnp.maximum(x, 1e-6)
    ref = jnp.mean(xc ** p[0], axis=(2, 3), keepdims=True) ** (1.0 / p[0])
    assert jnp.allclose(out, ref, rtol=1e-3, atol=1e-5), float(jnp.max(jnp.abs(out - ref)))

    print("KERNEL_OK")
</pallas_src>

<mosaic_0001>
module attributes {stable_mosaic.version = 11 : i64} {
  func.func @gem_kernel(%arg0: i32, %arg1: i32, %arg2: memref<1xf32, #tpu.memory_space<smem>>, %arg3: memref<2x4x256xf32, #tpu.memory_space<vmem>>, %arg4: memref<2x4x1xf32, #tpu.memory_space<vmem>>) attributes {dimension_semantics = [#tpu.dimension_semantics<parallel>, #tpu.dimension_semantics<parallel>], iteration_bounds = array<i64: 1, 1>, scalar_prefetch = 0 : i64, scratch_operands = 0 : i64, tpu.core_type = #tpu.core_type<tc>, window_params = [{transform_indices = @transform_0, window_bounds = array<i64: 1>}, {transform_indices = @transform_1, window_bounds = array<i64: 2, 4, 256>}, {transform_indices = @transform_2, window_bounds = array<i64: 2, 4, 1>}]} {
    %c0 = arith.constant 0 : index
    %0 = memref.load %arg2[%c0] : memref<1xf32, #tpu.memory_space<smem>>
    %c0_0 = arith.constant 0 : index
    %c0_1 = arith.constant 0 : index
    %c0_2 = arith.constant 0 : index
    %1 = vector.load %arg3[%c0_0, %c0_1, %c0_2] : memref<2x4x256xf32, #tpu.memory_space<vmem>>, vector<2x4x256xf32>
    %cst = arith.constant 9.99999997E-7 : f32
    %2 = vector.broadcast %cst : f32 to vector<2x4x256xf32>
    %3 = arith.maximumf %1, %2 : vector<2x4x256xf32>
    %4 = math.log %3 : vector<2x4x256xf32>
    %5 = vector.broadcast %0 : f32 to vector<2x4x256xf32>
    %6 = arith.mulf %5, %4 : vector<2x4x256xf32>
    %7 = math.exp %6 : vector<2x4x256xf32>
    %cst_3 = arith.constant dense<0.000000e+00> : vector<2x4xf32>
    %8 = vector.multi_reduction <add>, %7, %cst_3 [2] : vector<2x4x256xf32> to vector<2x4xf32>
    %9 = vector.shape_cast %8 : vector<2x4xf32> to vector<2x4x1xf32>
    %cst_4 = arith.constant 3.906250e-03 : f32
    %10 = vector.broadcast %cst_4 : f32 to vector<2x4x1xf32>
    %11 = arith.mulf %9, %10 : vector<2x4x1xf32>
    %cst_5 = arith.constant 1.000000e-30 : f32
    %12 = vector.broadcast %cst_5 : f32 to vector<2x4x1xf32>
    %13 = arith.maximumf %11, %12 : vector<2x4x1xf32>
    %14 = math.log %13 : vector<2x4x1xf32>
    %cst_6 = arith.constant 1.000000e+00 : f32
    %15 = arith.divf %cst_6, %0 : f32
    %16 = vector.broadcast %15 : f32 to vector<2x4x1xf32>
    %17 = arith.mulf %14, %16 : vector<2x4x1xf32>
    %18 = math.exp %17 : vector<2x4x1xf32>
    %c0_7 = arith.constant 0 : index
    %c0_8 = arith.constant 0 : index
    %c0_9 = arith.constant 0 : index
    %19 = vector.load %arg4[%c0_7, %c0_8, %c0_9] : memref<2x4x1xf32, #tpu.memory_space<vmem>>, vector<2x4x1xf32>
    tpu.vector_store %arg4[%c0_7, %c0_8, %c0_9], %18 {strides = array<i32>} : memref<2x4x1xf32, #tpu.memory_space<vmem>>, vector<2x4x1xf32>,
    return
  }
  func.func @transform_0(%arg0: i32, %arg1: i32) -> i32 {
    %c0_i32 = arith.constant 0 : i32
    %c0_i32_0 = arith.constant 0 : i32
    return %c0_i32 : i32
  }
  func.func @transform_1(%arg0: i32, %arg1: i32) -> (i32, i32, i32) {
    %c0_i32 = arith.constant 0 : i32
    %c0_i32_0 = arith.constant 0 : i32
    return %arg0, %arg1, %c0_i32 : i32, i32, i32
  }
  func.func @transform_2(%arg0: i32, %arg1: i32) -> (i32, i32, i32) {
    %c0_i32 = arith.constant 0 : i32
    %c0_i32_0 = arith.constant 0 : i32
    return %arg0, %arg1, %c0_i32 : i32, i32, i32
  }
}

</mosaic_0001>

<llo_original>
// kernel: gem_pooling.1
$region0: #{gem_pooling.1}
  #allocation0 [shape = 'u32[]', space=smem, size = 0x4, offset = 0x4, fixed_abs, tag = 'smem constant byte address 0x4 - core index']
  #allocation1 [shape = 'u32[144,128]{1,0:T(1,128)}', space=vmem, size = 0x12000, scoped, tag = 'internal scratch']
  #allocation2 [shape = 'f32[1]{0:T(128)S(6)}', space=smem, size = 0x200, scoped, tag = 'scoped memory for gem_pooling.1']
  %s0 = inlined_call_operand.<no memory space> [shape: f32[1], index: 0, kind: input, shape index: {}]
  %s1 = inlined_call_operand.vmem [shape: f32[2,4,256], index: 1, kind: input, shape index: {}]
  %s2 = inlined_call_operand.vmem [shape: f32[2,4,1], index: 2, kind: output, shape index: {}]
  %s3 = sld [smem:[#allocation0]]
  $region18: #{gem_pooling.1} parent=0
    _
  %s5 = ssub.s32 1, %s3
  %s6 = scalar_select 0, %s5, %s3
  %7 = sst [smem:[#allocation2]] %s0
  // Predicated region
  $region2: #{gem_pooling.1} parent=0 // pred_check
    _
  $region3: #{gem_pooling.1} parent=0 // pred_check_branch
    %9 = sbr.rel (0) target = $region5
  $region4: #{gem_pooling.1} parent=0 // pred_region
    _
  $region5: #{gem_pooling.1} parent=0 // pred_fallthru
    _
  // Predicated region
  $region6: #{gem_pooling.1} parent=0 // pred_check
    _
  $region7: #{gem_pooling.1} parent=0 // pred_check_branch
    %11 = sbr.rel (0) target = $region9
  $region8: #{gem_pooling.1} parent=0 // pred_region
    _
  $region9: #{gem_pooling.1} parent=0 // pred_fallthru
    _
  %s12 = sld [smem:[#allocation2]]
  %v13 = vld [vmem:[%s1] sm:$0xff]
  %v14 = vld [vmem:[%s1 + $0x8] sm:$0xff]
  %v15 = vmax.f32 %v13, 1e-06
  %v16 = vmax.f32 %v14, 1e-06
  %v17 = vlog2.pop %v15
  %v18 = vmul.f32 %v17, 0.6931472
  %v19 = vlog2.pop %v16
  %v20 = vmul.f32 %v19, 0.6931472
  %v21 = vstv %s12
  %v22 = vmul.f32 %v21, %v18
  %v23 = vmul.f32 %v21, %v20
  %v24 = vmul.f32 %v22, 1.442695
  %v25 = vpow.pop %v24
  %v26 = vmul.f32 %v23, 1.442695
  %v27 = vpow.pop %v26
  %v30 = vcombine.high %v25, %v25
  %v31 = vcombine.high %v27, %v27
  %vm34 = vcmask 1043456
  %v35 = vsel %vm34, %v25, 0.0
  %v36 = vsel %vm34, %v30, 0.0
  %v37 = vadd.f32 %v35, %v36
  %38 = vadd.xlane.f32.xlu0 %v37
  %v39 = vpop.xlane.xlu0 %38
  %v40 = vsel %vm34, %v27, 0.0
  %v41 = vsel %vm34, %v31, 0.0
  %v42 = vadd.f32 %v40, %v41
  %43 = vadd.xlane.f32.xlu0 %v42
  %v44 = vpop.xlane.xlu0 %43
  %v45 = vmul.f32 %v39, 0.00390625
  %v46 = vmul.f32 %v44, 0.00390625
  %v47 = vmax.f32 %v45, 1e-30
  %v48 = vmax.f32 %v46, 1e-30
  %v49 = vlog2.pop %v47
  %v50 = vmul.f32 %v49, 0.6931472
  %v51 = vlog2.pop %v48
  %v52 = vmul.f32 %v51, 0.6931472
  %v53 = vstv %s12
  %v54 = vrcp.pop %v53
  %s55 = vtos %v54
  %v56 = vstv %s55
  %v57 = vmul.f32 %v50, %v56
  %v58 = vmul.f32 %v52, %v56
  %v59 = vmul.f32 %v57, 1.442695
  %v60 = vpow.pop %v59
  %v61 = vmul.f32 %v58, 1.442695
  %v62 = vpow.pop %v61
  %vm63 = vcmask 3072
  %64 = vst.msk [vmem:[%s2] sm:$0xf] %vm63, %v60
  %65 = vst.msk [vmem:[%s2 + $0x4] sm:$0xf] %vm63, %v62
  // Predicated region
  $region10: #{gem_pooling.1} parent=0 // pred_check
    _
  $region11: #{gem_pooling.1} parent=0 // pred_check_branch
    %67 = sbr.rel (0) target = $region13
  $region12: #{gem_pooling.1} parent=0 // pred_region
    _
  $region13: #{gem_pooling.1} parent=0 // pred_fallthru
    _
  // Predicated region
  $region14: #{gem_pooling.1} parent=0 // pred_check
    _
  $region15: #{gem_pooling.1} parent=0 // pred_check_branch
    %69 = sbr.rel (0) target = $region17
  $region16: #{gem_pooling.1} parent=0 // pred_region
    _
  $region17: #{gem_pooling.1} parent=0 // pred_fallthru
    _

</llo_original>
